<compile_context>
chip_gen: v5e
topology: v5e:2x2
jax: 0.10.0
libtpu: 0.0.40
codegen_flags: <defaults>
</compile_context>

<pallas_src>
import jax
import jax.numpy as jnp
from jax.experimental import pallas as pl
from jax.experimental.pallas import tpu as pltpu


def _round_up(x, m):
    return (x + m - 1) // m * m


def _vmem_budget_bytes():
    """~75% of physical VMEM (v5e/v6e: 128 MiB, v7x: 64 MiB)."""
    try:
        cap = int(pltpu.get_tpu_info().vmem_capacity_bytes)
    except Exception:  # conservative fallback: assume v7x-sized VMEM
        cap = 64 * 1024 * 1024
    return (cap * 3) // 4


def _estimate_vmem_bytes(n, cp, c8p, tq, with_attn):
    """Rough per-step VMEM footprint (the pipeline double-buffers each spec)."""
    f32, bf16 = 4, 2
    est = 2 * n * cp * f32                       # x block (f32, double-buffered)
    est += 2 * (2 * cp * c8p + cp * cp) * bf16   # Wq/Wk/Wv (bf16, double-buffered)
    est += 2 * tq * cp * f32                     # residual-out tile (double-buffered)
    if with_attn:
        est += 2 * tq * n * f32                  # attention tile (double-buffered)
    est += n * (c8p + cp) * bf16                 # K / V per-batch scratch
    est += 3 * tq * n * f32                      # energy / exp / attn live values
    est += 2 * tq * max(cp, c8p) * f32           # q / o live values
    est += n * cp * f32                          # f32 K/V projection temp at qi == 0
    return est


def _choose_tq(n, cp, c8p, with_attn, budget):
    """Largest query-row tile (divisor of N, multiple of 8, or N itself) whose
    estimated VMEM footprint fits the per-generation budget."""
    cands = sorted({t for t in (1024, 512, 256, 128, 64, 32, 16, 8)
                    if t <= n and n % t == 0} | {n}, reverse=True)
    for tq in cands:
        if _estimate_vmem_bytes(n, cp, c8p, tq, with_attn) <= budget:
            return tq
    # TODO(synk): for very large N (>= ~8K feature-map pixels) add a kv grid
    # axis with a flash-style online softmax instead of holding the full
    # (N, Cp) K/V block in VMEM; the (B, N, N) attention output the module
    # must return also stops scaling there.
    return cands[-1]


def self_attn_pallas(x_nchw, wq, bq, wk, bk, wv, bv, gamma, *,
                     return_attention=True):
    """x_nchw: (B, C, W, H).  wq/wk: (C, C//8), wv: (C, C), 1-D biases,
    scalar gamma.  Returns (out (B, C, W, H), attention (B, N, N) or None)."""
    B, C, W, H = x_nchw.shape
    N = W * H
    C8 = wq.shape[1]
    Cp = _round_up(C, 128)           # lane-dense channel depth (residual / V)
    C8p = _round_up(C8, 128)         # lane-dense reduced depth (Q / K)

    budget = _vmem_budget_bytes()
    TQ = _choose_tq(N, Cp, C8p, return_attention, budget)
    NQ = N // TQ

    # (B, C, W, H) -> (B, N, C) rows, zero-padded to lane-dense Cp channels.
    # x stays f32 on the wire so the residual add is exact; it is cast to
    # bf16 inside the kernel right before the MXU contractions.
    x_rows = jnp.transpose(x_nchw.reshape(B, C, N), (0, 2, 1)).astype(jnp.float32)
    x_p = jnp.zeros((B, N, Cp), jnp.float32).at[:, :, :C].set(x_rows)

    # 1x1-conv weights as bf16 channel matmuls (MXU-native on v5e/v6e/v7x);
    # biases stay f32 and are broadcast-added after the f32 accumulation.
    wq_p = jnp.zeros((Cp, C8p), jnp.bfloat16).at[:C, :C8].set(wq.astype(jnp.bfloat16))
    wk_p = jnp.zeros((Cp, C8p), jnp.bfloat16).at[:C, :C8].set(wk.astype(jnp.bfloat16))
    wv_p = jnp.zeros((Cp, Cp), jnp.bfloat16).at[:C, :C].set(wv.astype(jnp.bfloat16))
    bq_p = jnp.zeros((1, C8p), jnp.float32).at[0, :C8].set(bq.astype(jnp.float32))
    bk_p = jnp.zeros((1, C8p), jnp.float32).at[0, :C8].set(bk.astype(jnp.float32))
    bv_p = jnp.zeros((1, Cp), jnp.float32).at[0, :C].set(bv.astype(jnp.float32))
    gamma_arr = jnp.asarray(gamma, jnp.float32).reshape(1)

    n_out = 2 if return_attention else 1

    def kernel(x_ref, wq_ref, wk_ref, wv_ref, bq_ref, bk_ref, bv_ref,
               gamma_ref, *rest):
        out_ref = rest[0]
        attn_ref = rest[1] if return_attention else None
        k_sc, v_sc = rest[n_out], rest[n_out + 1]

        qi = pl.program_id(1)

        # K / V projections, computed ONCE per batch element (qi == 0) into
        # bf16 VMEM scratch and reused by every query tile ("arbitrary" qi).
        @pl.when(qi == 0)
        def _():
            x_all = x_ref[0].astype(jnp.bfloat16)                          # (N, Cp)
            k = jnp.dot(x_all, wk_ref[...],
                        preferred_element_type=jnp.float32) + bk_ref[...]  # (N, C8p)
            v = jnp.dot(x_all, wv_ref[...],
                        preferred_element_type=jnp.float32) + bv_ref[...]  # (N, Cp)
            k_sc[...] = k.astype(jnp.bfloat16)
            v_sc[...] = v.astype(jnp.bfloat16)

        # Query rows for this tile, sliced from the already-resident x block
        # (no second DMA stream over the same HBM array).
        row0 = pl.multiple_of(qi * TQ, TQ)
        x_q = x_ref[0, pl.ds(row0, TQ), :]                                 # (TQ, Cp) f32
        q = jnp.dot(x_q.astype(jnp.bfloat16), wq_ref[...],
                    preferred_element_type=jnp.float32) + bq_ref[...]      # (TQ, C8p)

        # energy = Q @ K^T, contracting the reduced (C//8, padded) depth only.
        energy = jax.lax.dot_general(
            q.astype(jnp.bfloat16), k_sc[...],
            dimension_numbers=(((1,), (1,)), ((), ())),
            preferred_element_type=jnp.float32)                            # (TQ, N)

        # Exact softmax over the full (in-block) key axis.  Elementwise math
        # stays f32 so the same code is fast on v5e (no bf16 VPU/EUP there).
        m = jnp.max(energy, axis=-1, keepdims=True)
        p = jnp.exp(energy - m)
        s = jnp.sum(p, axis=-1, keepdims=True)
        attn = p * (1.0 / s)          # exact divide on (TQ, 1): negligible cost

        # Weighted sum of the per-batch V scratch; p fed to the MXU as bf16.
        o = jnp.dot(attn.astype(jnp.bfloat16), v_sc[...],
                    preferred_element_type=jnp.float32)                    # (TQ, Cp)

        gamma_v = gamma_ref[0]                                             # SMEM scalar
        out_ref[0] = (gamma_v * o + x_q).astype(out_ref.dtype)
        if attn_ref is not None:
            attn_ref[0] = attn.astype(attn_ref.dtype)

    in_specs = [
        pl.BlockSpec((1, N, Cp), lambda b, qi: (b, 0, 0)),      # x rows (per batch)
        pl.BlockSpec((Cp, C8p), lambda b, qi: (0, 0)),          # Wq (bf16)
        pl.BlockSpec((Cp, C8p), lambda b, qi: (0, 0)),          # Wk (bf16)
        pl.BlockSpec((Cp, Cp), lambda b, qi: (0, 0)),           # Wv (bf16)
        pl.BlockSpec((1, C8p), lambda b, qi: (0, 0)),           # bq
        pl.BlockSpec((1, C8p), lambda b, qi: (0, 0)),           # bk
        pl.BlockSpec((1, Cp), lambda b, qi: (0, 0)),            # bv
        pl.BlockSpec(memory_space=pltpu.MemorySpace.SMEM),      # gamma scalar
    ]
    out_shapes = [jax.ShapeDtypeStruct((B, N, Cp), jnp.float32)]
    out_specs = [pl.BlockSpec((1, TQ, Cp), lambda b, qi: (b, qi, 0))]
    if return_attention:
        # Kept f32 to match the module's softmax output exactly; callers that
        # discard the map should pass return_attention=False to skip the
        # (B, N, N) HBM writeback entirely.
        out_shapes.append(jax.ShapeDtypeStruct((B, N, N), jnp.float32))
        out_specs.append(pl.BlockSpec((1, TQ, N), lambda b, qi: (b, qi, 0)))

    res = pl.pallas_call(
        kernel,
        out_shape=out_shapes,
        grid_spec=pltpu.PrefetchScalarGridSpec(
            num_scalar_prefetch=0,
            grid=(B, NQ),
            in_specs=in_specs,
            out_specs=out_specs,
            scratch_shapes=[
                pltpu.VMEM((N, C8p), jnp.bfloat16),   # K scratch (per batch)
                pltpu.VMEM((N, Cp), jnp.bfloat16),    # V scratch (per batch)
            ]),
        compiler_params=pltpu.CompilerParams(
            # b is independent (megacore-shardable on v7x); qi carries the
            # per-batch K/V scratch, so it must stay "arbitrary".
            dimension_semantics=("parallel", "arbitrary"),
            vmem_limit_bytes=int(budget)),
    )(x_p, wq_p, wk_p, wv_p, bq_p, bk_p, bv_p, gamma_arr)

    out_pad = res[0]
    out_rows = out_pad[:, :, :C].astype(x_nchw.dtype)            # drop channel padding
    out_nchw = jnp.transpose(out_rows, (0, 2, 1)).reshape(B, C, W, H)
    attn = res[1] if return_attention else None
    return out_nchw, attn


def self_attn_reference(x_nchw, wq, bq, wk, bk, wv, bv, gamma):
    """Pure-JAX reference mirroring the PyTorch forward (f32 throughout)."""
    B, C, W, H = x_nchw.shape
    N = W * H
    x_flat = jnp.transpose(x_nchw.reshape(B, C, N), (0, 2, 1))   # (B, N, C)
    q = x_flat @ wq + bq                                         # (B, N, C//8)
    k = x_flat @ wk + bk
    v = x_flat @ wv + bv                                         # (B, N, C)
    energy = jnp.einsum("bnc,bmc->bnm", q, k)
    attn = jax.nn.softmax(energy, axis=-1)
    o = jnp.einsum("bnm,bmc->bnc", attn, v)
    out = gamma * o + x_flat
    out_nchw = jnp.transpose(out, (0, 2, 1)).reshape(B, C, W, H)
    return out_nchw, attn


if __name__ == "__main__":
    # Small shapes consistent with Self_Attn(in_dim=16): B=2, C=16, W=H=8.
    B, C, W, H = 2, 16, 8, 8
    C8 = C // 8

    key = jax.random.PRNGKey(0)
    kx, kwq, kbq, kwk, kbk, kwv, kbv = jax.random.split(key, 7)

    x = jax.random.normal(kx, (B, C, W, H), dtype=jnp.float32)

    # Conv2d(kernel_size=1) weights stored as channel matmuls (in, out).
    wq = jax.random.normal(kwq, (C, C8), dtype=jnp.float32) * 0.1
    bq = jax.random.normal(kbq, (C8,), dtype=jnp.float32) * 0.1
    wk = jax.random.normal(kwk, (C, C8), dtype=jnp.float32) * 0.1
    bk = jax.random.normal(kbk, (C8,), dtype=jnp.float32) * 0.1
    wv = jax.random.normal(kwv, (C, C), dtype=jnp.float32) * 0.1
    bv = jax.random.normal(kbv, (C,), dtype=jnp.float32) * 0.1
    # PyTorch inits gamma to 0 (out == x); use a nonzero value so the
    # attention path actually contributes to the output.
    gamma = jnp.float32(0.5)

    out, attn = jax.jit(self_attn_pallas)(x, wq, bq, wk, bk, wv, bv, gamma)
    jax.block_until_ready((out, attn))

    out_ref, attn_ref = self_attn_reference(x, wq, bq, wk, bk, wv, bv, gamma)
    assert out.shape == (B, C, W, H)
    assert attn.shape == (B, W * H, W * H)
    # Tolerances reflect bf16 MXU operands (f32 accumulation, exact f32
    # softmax and residual) vs. the all-f32 reference.
    assert jnp.allclose(attn, attn_ref, atol=1e-2, rtol=1e-2), \
        float(jnp.max(jnp.abs(attn - attn_ref)))
    assert jnp.allclose(out, out_ref, atol=1e-2, rtol=1e-2), \
        float(jnp.max(jnp.abs(out - out_ref)))

    print("KERNEL_OK")
</pallas_src>

<mosaic_0001>
module attributes {stable_mosaic.version = 11 : i64} {
  func.func @kernel(%arg0: i32, %arg1: i32, %arg2: memref<1x64x128xf32, #tpu.memory_space<vmem>>, %arg3: memref<128x128xbf16, #tpu.memory_space<vmem>>, %arg4: memref<128x128xbf16, #tpu.memory_space<vmem>>, %arg5: memref<128x128xbf16, #tpu.memory_space<vmem>>, %arg6: memref<1x128xf32, #tpu.memory_space<vmem>>, %arg7: memref<1x128xf32, #tpu.memory_space<vmem>>, %arg8: memref<1x128xf32, #tpu.memory_space<vmem>>, %arg9: memref<1xf32, #tpu.memory_space<smem>>, %arg10: memref<1x64x128xf32, #tpu.memory_space<vmem>>, %arg11: memref<1x64x64xf32, #tpu.memory_space<vmem>>, %arg12: memref<64x128xbf16, #tpu.memory_space<vmem>>, %arg13: memref<64x128xbf16, #tpu.memory_space<vmem>>) attributes {dimension_semantics = [#tpu.dimension_semantics<parallel>, #tpu.dimension_semantics<arbitrary>], iteration_bounds = array<i64: 2, 1>, scalar_prefetch = 0 : i64, scratch_operands = 2 : i64, tpu.core_type = #tpu.core_type<tc>, window_params = [{transform_indices = @transform_0, window_bounds = array<i64: 1, 64, 128>}, {pipeline_mode = #tpu.pipeline_mode<synchronous>, transform_indices = @transform_1, window_bounds = array<i64: 128, 128>}, {pipeline_mode = #tpu.pipeline_mode<synchronous>, transform_indices = @transform_2, window_bounds = array<i64: 128, 128>}, {pipeline_mode = #tpu.pipeline_mode<synchronous>, transform_indices = @transform_3, window_bounds = array<i64: 128, 128>}, {pipeline_mode = #tpu.pipeline_mode<synchronous>, transform_indices = @transform_4, window_bounds = array<i64: 1, 128>}, {pipeline_mode = #tpu.pipeline_mode<synchronous>, transform_indices = @transform_5, window_bounds = array<i64: 1, 128>}, {pipeline_mode = #tpu.pipeline_mode<synchronous>, transform_indices = @transform_6, window_bounds = array<i64: 1, 128>}, {transform_indices = @transform_7, window_bounds = array<i64: 1>}, {transform_indices = @transform_8, window_bounds = array<i64: 1, 64, 128>}, {transform_indices = @transform_9, window_bounds = array<i64: 1, 64, 64>}]} {
    %c0_i32 = arith.constant 0 : i32
    %0 = arith.cmpi eq, %arg1, %c0_i32 : i32
    %1 = arith.extui %0 : i1 to i32
    %c0_i32_0 = arith.constant 0 : i32
    %2 = arith.cmpi ne, %1, %c0_i32_0 : i32
    scf.if %2 {
      %c0_22 = arith.constant 0 : index
      %c0_23 = arith.constant 0 : index
      %c0_24 = arith.constant 0 : index
      %41 = vector.load %arg2[%c0_22, %c0_23, %c0_24] : memref<1x64x128xf32, #tpu.memory_space<vmem>>, vector<1x64x128xf32>
      %42 = vector.shape_cast %41 : vector<1x64x128xf32> to vector<64x128xf32>
      %43 = arith.truncf %42 : vector<64x128xf32> to vector<64x128xbf16>
      %c0_25 = arith.constant 0 : index
      %c0_26 = arith.constant 0 : index
      %44 = vector.load %arg4[%c0_25, %c0_26] : memref<128x128xbf16, #tpu.memory_space<vmem>>, vector<128x128xbf16>
      %cst_27 = arith.constant dense<0.000000e+00> : vector<64x128xf32>
      %45 = tpu.matmul %43, %44, %cst_27 {dimension_numbers = #tpu.dot_dimension_numbers<[1], [0], [0], [1], [0, 0, 1, 1], [], []>} : vector<64x128xbf16>, vector<128x128xbf16>, vector<64x128xf32> -> vector<64x128xf32>
      %c0_28 = arith.constant 0 : index
      %c0_29 = arith.constant 0 : index
      %46 = vector.load %arg7[%c0_28, %c0_29] : memref<1x128xf32, #tpu.memory_space<vmem>>, vector<1x128xf32>
      %47 = vector.broadcast %46 : vector<1x128xf32> to vector<64x128xf32>
      %48 = arith.addf %45, %47 : vector<64x128xf32>
      %c0_30 = arith.constant 0 : index
      %c0_31 = arith.constant 0 : index
      %49 = vector.load %arg5[%c0_30, %c0_31] : memref<128x128xbf16, #tpu.memory_space<vmem>>, vector<128x128xbf16>
      %cst_32 = arith.constant dense<0.000000e+00> : vector<64x128xf32>
      %50 = tpu.matmul %43, %49, %cst_32 {dimension_numbers = #tpu.dot_dimension_numbers<[1], [0], [0], [1], [0, 0, 1, 1], [], []>} : vector<64x128xbf16>, vector<128x128xbf16>, vector<64x128xf32> -> vector<64x128xf32>
      %c0_33 = arith.constant 0 : index
      %c0_34 = arith.constant 0 : index
      %51 = vector.load %arg8[%c0_33, %c0_34] : memref<1x128xf32, #tpu.memory_space<vmem>>, vector<1x128xf32>
      %52 = vector.broadcast %51 : vector<1x128xf32> to vector<64x128xf32>
      %53 = arith.addf %50, %52 : vector<64x128xf32>
      %54 = arith.truncf %48 : vector<64x128xf32> to vector<64x128xbf16>
      %c0_35 = arith.constant 0 : index
      %c0_36 = arith.constant 0 : index
      %55 = vector.load %arg12[%c0_35, %c0_36] : memref<64x128xbf16, #tpu.memory_space<vmem>>, vector<64x128xbf16>
      tpu.vector_store %arg12[%c0_35, %c0_36], %54 {strides = array<i32>} : memref<64x128xbf16, #tpu.memory_space<vmem>>, vector<64x128xbf16>,
      %56 = arith.truncf %53 : vector<64x128xf32> to vector<64x128xbf16>
      %c0_37 = arith.constant 0 : index
      %c0_38 = arith.constant 0 : index
      %57 = vector.load %arg13[%c0_37, %c0_38] : memref<64x128xbf16, #tpu.memory_space<vmem>>, vector<64x128xbf16>
      tpu.vector_store %arg13[%c0_37, %c0_38], %56 {strides = array<i32>} : memref<64x128xbf16, #tpu.memory_space<vmem>>, vector<64x128xbf16>,
    } else {
    }
    %c64_i32 = arith.constant 64 : i32
    %3 = arith.muli %arg1, %c64_i32 : i32
    %4 = tpu.assume_multiple %3, 64 : i32
    %c0 = arith.constant 0 : index
    %5 = arith.index_cast %4 : i32 to index
    %c0_1 = arith.constant 0 : index
    %6 = vector.load %arg2[%c0, %5, %c0_1] : memref<1x64x128xf32, #tpu.memory_space<vmem>>, vector<1x64x128xf32>
    %7 = vector.shape_cast %6 : vector<1x64x128xf32> to vector<64x128xf32>
    %8 = arith.truncf %7 : vector<64x128xf32> to vector<64x128xbf16>
    %c0_2 = arith.constant 0 : index
    %c0_3 = arith.constant 0 : index
    %9 = vector.load %arg3[%c0_2, %c0_3] : memref<128x128xbf16, #tpu.memory_space<vmem>>, vector<128x128xbf16>
    %cst = arith.constant dense<0.000000e+00> : vector<64x128xf32>
    %10 = tpu.matmul %8, %9, %cst {dimension_numbers = #tpu.dot_dimension_numbers<[1], [0], [0], [1], [0, 0, 1, 1], [], []>} : vector<64x128xbf16>, vector<128x128xbf16>, vector<64x128xf32> -> vector<64x128xf32>
    %c0_4 = arith.constant 0 : index
    %c0_5 = arith.constant 0 : index
    %11 = vector.load %arg6[%c0_4, %c0_5] : memref<1x128xf32, #tpu.memory_space<vmem>>, vector<1x128xf32>
    %12 = vector.broadcast %11 : vector<1x128xf32> to vector<64x128xf32>
    %13 = arith.addf %10, %12 : vector<64x128xf32>
    %14 = arith.truncf %13 : vector<64x128xf32> to vector<64x128xbf16>
    %c0_6 = arith.constant 0 : index
    %c0_7 = arith.constant 0 : index
    %15 = vector.load %arg12[%c0_6, %c0_7] : memref<64x128xbf16, #tpu.memory_space<vmem>>, vector<64x128xbf16>
    %cst_8 = arith.constant dense<0.000000e+00> : vector<64x64xf32>
    %16 = tpu.matmul %14, %15, %cst_8 {dimension_numbers = #tpu.dot_dimension_numbers<[1], [1], [0], [0], [0, 0, 1, 0], [], []>} : vector<64x128xbf16>, vector<64x128xbf16>, vector<64x64xf32> -> vector<64x64xf32>
    %cst_9 = arith.constant dense<0xFF800000> : vector<64xf32>
    %17 = vector.multi_reduction <maximumf>, %16, %cst_9 [1] : vector<64x64xf32> to vector<64xf32>
    %18 = vector.shape_cast %17 : vector<64xf32> to vector<64x1xf32>
    %19 = vector.broadcast %18 : vector<64x1xf32> to vector<64x64xf32>
    %20 = arith.subf %16, %19 : vector<64x64xf32>
    %21 = math.exp %20 : vector<64x64xf32>
    %cst_10 = arith.constant dense<0.000000e+00> : vector<64xf32>
    %22 = vector.multi_reduction <add>, %21, %cst_10 [1] : vector<64x64xf32> to vector<64xf32>
    %23 = vector.shape_cast %22 : vector<64xf32> to vector<64x1xf32>
    %cst_11 = arith.constant 1.000000e+00 : f32
    %24 = vector.broadcast %cst_11 : f32 to vector<64x1xf32>
    %25 = arith.divf %24, %23 : vector<64x1xf32>
    %26 = vector.broadcast %25 : vector<64x1xf32> to vector<64x64xf32>
    %27 = arith.mulf %21, %26 : vector<64x64xf32>
    %28 = arith.truncf %27 : vector<64x64xf32> to vector<64x64xbf16>
    %c0_12 = arith.constant 0 : index
    %c0_13 = arith.constant 0 : index
    %29 = vector.load %arg13[%c0_12, %c0_13] : memref<64x128xbf16, #tpu.memory_space<vmem>>, vector<64x128xbf16>
    %cst_14 = arith.constant dense<0.000000e+00> : vector<64x128xf32>
    %30 = tpu.matmul %28, %29, %cst_14 {dimension_numbers = #tpu.dot_dimension_numbers<[1], [0], [0], [1], [0, 0, 1, 1], [], []>} : vector<64x64xbf16>, vector<64x128xbf16>, vector<64x128xf32> -> vector<64x128xf32>
    %c0_15 = arith.constant 0 : index
    %31 = memref.load %arg9[%c0_15] : memref<1xf32, #tpu.memory_space<smem>>
    %32 = vector.broadcast %31 : f32 to vector<64x128xf32>
    %33 = arith.mulf %32, %30 : vector<64x128xf32>
    %34 = arith.addf %33, %7 : vector<64x128xf32>
    %c0_16 = arith.constant 0 : index
    %c0_17 = arith.constant 0 : index
    %c0_18 = arith.constant 0 : index
    %35 = vector.load %arg10[%c0_16, %c0_17, %c0_18] : memref<1x64x128xf32, #tpu.memory_space<vmem>>, vector<1x64x128xf32>
    %36 = vector.shape_cast %35 : vector<1x64x128xf32> to vector<64x128xf32>
    %37 = vector.shape_cast %34 : vector<64x128xf32> to vector<1x64x128xf32>
    tpu.vector_store %arg10[%c0_16, %c0_17, %c0_18], %37 {strides = array<i32>} : memref<1x64x128xf32, #tpu.memory_space<vmem>>, vector<1x64x128xf32>,
    %c0_19 = arith.constant 0 : index
    %c0_20 = arith.constant 0 : index
    %c0_21 = arith.constant 0 : index
    %38 = vector.load %arg11[%c0_19, %c0_20, %c0_21] : memref<1x64x64xf32, #tpu.memory_space<vmem>>, vector<1x64x64xf32>
    %39 = vector.shape_cast %38 : vector<1x64x64xf32> to vector<64x64xf32>
    %40 = vector.shape_cast %27 : vector<64x64xf32> to vector<1x64x64xf32>
    tpu.vector_store %arg11[%c0_19, %c0_20, %c0_21], %40 {strides = array<i32>} : memref<1x64x64xf32, #tpu.memory_space<vmem>>, vector<1x64x64xf32>,
    return
  }
  func.func @transform_0(%arg0: i32, %arg1: i32) -> (i32, i32, i32) {
    %c0_i32 = arith.constant 0 : i32
    %c0_i32_0 = arith.constant 0 : i32
    %c0_i32_1 = arith.constant 0 : i32
    return %arg0, %c0_i32, %c0_i32_0 : i32, i32, i32
  }
  func.func @transform_1(%arg0: i32, %arg1: i32) -> (i32, i32) {
    %c0_i32 = arith.constant 0 : i32
    %c0_i32_0 = arith.constant 0 : i32
    %c0_i32_1 = arith.constant 0 : i32
    return %c0_i32, %c0_i32_0 : i32, i32
  }
  func.func @transform_2(%arg0: i32, %arg1: i32) -> (i32, i32) {
    %c0_i32 = arith.constant 0 : i32
    %c0_i32_0 = arith.constant 0 : i32
    %c0_i32_1 = arith.constant 0 : i32
    return %c0_i32, %c0_i32_0 : i32, i32
  }
  func.func @transform_3(%arg0: i32, %arg1: i32) -> (i32, i32) {
    %c0_i32 = arith.constant 0 : i32
    %c0_i32_0 = arith.constant 0 : i32
    %c0_i32_1 = arith.constant 0 : i32
    return %c0_i32, %c0_i32_0 : i32, i32
  }
  func.func @transform_4(%arg0: i32, %arg1: i32) -> (i32, i32) {
    %c0_i32 = arith.constant 0 : i32
    %c0_i32_0 = arith.constant 0 : i32
    %c0_i32_1 = arith.constant 0 : i32
    return %c0_i32, %c0_i32_0 : i32, i32
  }
  func.func @transform_5(%arg0: i32, %arg1: i32) -> (i32, i32) {
    %c0_i32 = arith.constant 0 : i32
    %c0_i32_0 = arith.constant 0 : i32
    %c0_i32_1 = arith.constant 0 : i32
    return %c0_i32, %c0_i32_0 : i32, i32
  }
  func.func @transform_6(%arg0: i32, %arg1: i32) -> (i32, i32) {
    %c0_i32 = arith.constant 0 : i32
    %c0_i32_0 = arith.constant 0 : i32
    %c0_i32_1 = arith.constant 0 : i32
    return %c0_i32, %c0_i32_0 : i32, i32
  }
  func.func @transform_7(%arg0: i32, %arg1: i32) -> i32 {
    %c0_i32 = arith.constant 0 : i32
    %c0_i32_0 = arith.constant 0 : i32
    return %c0_i32 : i32
  }
  func.func @transform_8(%arg0: i32, %arg1: i32) -> (i32, i32, i32) {
    %c0_i32 = arith.constant 0 : i32
    %c0_i32_0 = arith.constant 0 : i32
    return %arg0, %arg1, %c0_i32 : i32, i32, i32
  }
  func.func @transform_9(%arg0: i32, %arg1: i32) -> (i32, i32, i32) {
    %c0_i32 = arith.constant 0 : i32
    %c0_i32_0 = arith.constant 0 : i32
    return %arg0, %arg1, %c0_i32 : i32, i32, i32
  }
}

</mosaic_0001>

<llo_original>
// kernel: self_attn_pallas.1
$region0: #{self_attn_pallas.1}
  #allocation0 [shape = 'u32[]', space=smem, size = 0x4, offset = 0x4, fixed_abs, tag = 'smem constant byte address 0x4 - core index']
  #allocation1 [shape = 'u32[72,128]{1,0:T(1,128)}', space=vmem, size = 0x9000, scoped, tag = 'internal scratch']
  #allocation2 [shape = 'bf16[64,128]{1,0:T(8,128)(2,1)}', space=vmem, size = 0x4000, scoped, tag = 'scratch operand']
  #allocation3 [shape = 'bf16[64,128]{1,0:T(8,128)(2,1)}', space=vmem, size = 0x4000, scoped, tag = 'scratch operand']
  #allocation4 [shape = 'f32[1]{0:T(128)S(6)}', space=smem, size = 0x200, scoped, tag = 'scoped memory for self_attn_pallas.1']
  %s0 = inlined_call_operand.vmem [shape: f32[2,64,128], index: 0, kind: input, shape index: {}]
  %s1 = inlined_call_operand.vmem [shape: bf16[128,128], index: 1, kind: input, shape index: {}]
  %s2 = inlined_call_operand.vmem [shape: bf16[128,128], index: 2, kind: input, shape index: {}]
  %s3 = inlined_call_operand.vmem [shape: bf16[128,128], index: 3, kind: input, shape index: {}]
  %s4 = inlined_call_operand.vmem [shape: f32[1,128], index: 4, kind: input, shape index: {}]
  %s5 = inlined_call_operand.vmem [shape: f32[1,128], index: 5, kind: input, shape index: {}]
  %s6 = inlined_call_operand.vmem [shape: f32[1,128], index: 6, kind: input, shape index: {}]
  %s7 = inlined_call_operand.<no memory space> [shape: f32[1], index: 7, kind: input, shape index: {}]
  %s8 = inlined_call_operand.vmem [shape: f32[2,64,128], index: 8, kind: output, shape index: {0}]
  %s9 = inlined_call_operand.hbm [shape: f32[2,64,64], index: 9, kind: output, shape index: {1}]
  %10 = xla_tuple %s8, %s9
  %s11 = sld [smem:[#allocation0]]
  $region77: #{self_attn_pallas.1} parent=0
    _
  %s13 = ssub.s32 1, %s11
  %s14 = scalar_select 0, %s13, %s11
  %15 = sst [smem:[#allocation4]] %s7
  $region1: #{self_attn_pallas.1} parent=0
    #allocation5 [shape = 'u8[65536]{0}', space=vmem, size = 0x10000, scoped, tag = 'output window, operand 1']
    #allocation6 [shape = 's32[2]{0}', space=sflag, size = 0x8, scoped, tag = 'scoped memory for self_attn_pallas.1']
    %16 = vsyncpa [#allocation6], 0
    %s17 = scalar_lea.sflag [#allocation6], 1
    %18 = vsyncpa %s17, 0
    loop: start=0, step=1, limit=4
    $region2: #{self_attn_pallas.1} parent=1 // loop_pre_header
      _
    $region3: #{self_attn_pallas.1} parent=1 // loop_header
      %s20 = sphi 0, %s24
      %p21 = scmp.ge.s32.totalorder %s20, 4
      %s27 = sphi 0, %s39
      %s28 = sphi 0, %s35
      %s29 = sphi 0, %s27
      %s30 = sphi 0, %s28
      %s31 = sphi 0, %s29
      %s32 = sphi 0, %s30
      %s42 = sphi 0, %s44
      %s45 = sphi 0, %s42
      %s46 = sphi 0, %s45
      %s62 = sphi 0, %s46
      %s66 = sphi 0, %s66
      %s68 = sphi 0, %s66
      %s69 = sphi 0, %s68
      %s83 = sphi 0, %s69
      %s87 = sphi 0, %s87
      %s89 = sphi 0, %s87
      %s90 = sphi 0, %s89
      %s104 = sphi 0, %s90
      %s108 = sphi 0, %s108
      %s110 = sphi 0, %s108
      %s111 = sphi 0, %s110
      %s125 = sphi 0, %s111
      %s129 = sphi 0, %s129
      %s131 = sphi 0, %s129
      %s132 = sphi 0, %s131
      %s146 = sphi 0, %s132
      %s150 = sphi 0, %s150
      %s152 = sphi 0, %s150
      %s153 = sphi 0, %s152
      %s167 = sphi 0, %s153
      %s171 = sphi 0, %s171
      %s173 = sphi 0, %s171
      %s174 = sphi 0, %s173
      %s188 = sphi 0, %s174
      %s192 = sphi 0, %s192
      %s194 = sphi 0, %s192
      %s195 = sphi 0, %s194
      %s209 = sphi 0, %s195
      %s217 = sphi 0, %s219
      %s220 = sphi 0, %s217
      %s221 = sphi 0, %s220
      %s237 = sphi 0, %s221
      %s245 = sphi 0, %s247
      %s248 = sphi 0, %s245
      %s249 = sphi 0, %s248
      %s265 = sphi 0, %s249
    $region4: #{self_attn_pallas.1} parent=1 // loop_header_branch
      %23 = sbr.rel (%p21) target = $region8
    $region5: #{self_attn_pallas.1} parent=1 // loop_body
      %s25 = ssub.s32 %s20, 1
      %s26 = ssub.s32 %s20, 2
      %s33 = sadd.s32 1, %s28
      %p34 = scmp.ge.s32.totalorder %s33, 1
      %s35 = scalar_select %p34, 0, %s33
      %s36 = sadd.s32 1, %s27
      %s37 = scalar_select %p34, %s36, %s27
      %p38 = scmp.ge.s32.totalorder %s37, 2
      %s39 = scalar_select %p38, 0, %s37
      %s40 = ssub.s32 %s27, %s39
      %p41 = scmp.eq.s32.totalorder %s40, 0
      %s43 = sadd.s32 %s42, 1
      %s44 = scalar_select %p41, %s42, %s43
      %p47 = pneg %p41
      %p48 = scmp.eq.s32.totalorder %s20, 1
      %p49 = por %p47, %p48
      %p50 = scmp.ne.s32.totalorder %s42, %s45
      %p51 = scmp.eq.s32.totalorder %s20, 0
      %p52 = por %p50, %p51
      %p53 = scmp.ne.s32.totalorder %s42, %s45
      %p54 = scmp.eq.s32.totalorder %s25, 1
      %p55 = por %p53, %p54
      %p56 = scmp.ne.s32.totalorder %s45, %s46
      %p57 = scmp.eq.s32.totalorder %s25, 0
      %p58 = por %p56, %p57
      %p59 = scmp.ne.s32.totalorder %s45, %s46
      %p60 = scmp.eq.s32.totalorder %s26, 1
      %p61 = por %p59, %p60
      %p63 = scmp.ne.s32.totalorder %s46, %s62
      %p64 = scmp.eq.s32.totalorder %s26, 0
      %p65 = por %p63, %p64
      %s67 = sadd.s32 %s66, 1
      %p70 = scmp.eq.s32.totalorder %s20, 1
      %p71 = scmp.ne.s32.totalorder %s66, %s68
      %p72 = scmp.eq.s32.totalorder %s20, 0
      %p73 = por %p71, %p72
      %p74 = scmp.ne.s32.totalorder %s66, %s68
      %p75 = scmp.eq.s32.totalorder %s25, 1
      %p76 = por %p74, %p75
      %p77 = scmp.ne.s32.totalorder %s68, %s69
      %p78 = scmp.eq.s32.totalorder %s25, 0
      %p79 = por %p77, %p78
      %p80 = scmp.ne.s32.totalorder %s68, %s69
      %p81 = scmp.eq.s32.totalorder %s26, 1
      %p82 = por %p80, %p81
      %p84 = scmp.ne.s32.totalorder %s69, %s83
      %p85 = scmp.eq.s32.totalorder %s26, 0
      %p86 = por %p84, %p85
      %s88 = sadd.s32 %s87, 1
      %p91 = scmp.eq.s32.totalorder %s20, 1
      %p92 = scmp.ne.s32.totalorder %s87, %s89
      %p93 = scmp.eq.s32.totalorder %s20, 0
      %p94 = por %p92, %p93
      %p95 = scmp.ne.s32.totalorder %s87, %s89
      %p96 = scmp.eq.s32.totalorder %s25, 1
      %p97 = por %p95, %p96
      %p98 = scmp.ne.s32.totalorder %s89, %s90
      %p99 = scmp.eq.s32.totalorder %s25, 0
      %p100 = por %p98, %p99
      %p101 = scmp.ne.s32.totalorder %s89, %s90
      %p102 = scmp.eq.s32.totalorder %s26, 1
      %p103 = por %p101, %p102
      %p105 = scmp.ne.s32.totalorder %s90, %s104
      %p106 = scmp.eq.s32.totalorder %s26, 0
      %p107 = por %p105, %p106
      %s109 = sadd.s32 %s108, 1
      %p112 = scmp.eq.s32.totalorder %s20, 1
      %p113 = scmp.ne.s32.totalorder %s108, %s110
      %p114 = scmp.eq.s32.totalorder %s20, 0
      %p115 = por %p113, %p114
      %p116 = scmp.ne.s32.totalorder %s108, %s110
      %p117 = scmp.eq.s32.totalorder %s25, 1
      %p118 = por %p116, %p117
      %p119 = scmp.ne.s32.totalorder %s110, %s111
      %p120 = scmp.eq.s32.totalorder %s25, 0
      %p121 = por %p119, %p120
      %p122 = scmp.ne.s32.totalorder %s110, %s111
      %p123 = scmp.eq.s32.totalorder %s26, 1
      %p124 = por %p122, %p123
      %p126 = scmp.ne.s32.totalorder %s111, %s125
      %p127 = scmp.eq.s32.totalorder %s26, 0
      %p128 = por %p126, %p127
      %s130 = sadd.s32 %s129, 1
      %p133 = scmp.eq.s32.totalorder %s20, 1
      %p134 = scmp.ne.s32.totalorder %s129, %s131
      %p135 = scmp.eq.s32.totalorder %s20, 0
      %p136 = por %p134, %p135
      %p137 = scmp.ne.s32.totalorder %s129, %s131
      %p138 = scmp.eq.s32.totalorder %s25, 1
      %p139 = por %p137, %p138
      %p140 = scmp.ne.s32.totalorder %s131, %s132
      %p141 = scmp.eq.s32.totalorder %s25, 0
      %p142 = por %p140, %p141
      %p143 = scmp.ne.s32.totalorder %s131, %s132
      %p144 = scmp.eq.s32.totalorder %s26, 1
      %p145 = por %p143, %p144
      %p147 = scmp.ne.s32.totalorder %s132, %s146
      %p148 = scmp.eq.s32.totalorder %s26, 0
      %p149 = por %p147, %p148
      %s151 = sadd.s32 %s150, 1
      %p154 = scmp.eq.s32.totalorder %s20, 1
      %p155 = scmp.ne.s32.totalorder %s150, %s152
      %p156 = scmp.eq.s32.totalorder %s20, 0
      %p157 = por %p155, %p156
      %p158 = scmp.ne.s32.totalorder %s150, %s152
      %p159 = scmp.eq.s32.totalorder %s25, 1
      %p160 = por %p158, %p159
      %p161 = scmp.ne.s32.totalorder %s152, %s153
      %p162 = scmp.eq.s32.totalorder %s25, 0
      %p163 = por %p161, %p162
      %p164 = scmp.ne.s32.totalorder %s152, %s153
      %p165 = scmp.eq.s32.totalorder %s26, 1
      %p166 = por %p164, %p165
      %p168 = scmp.ne.s32.totalorder %s153, %s167
      %p169 = scmp.eq.s32.totalorder %s26, 0
      %p170 = por %p168, %p169
      %s172 = sadd.s32 %s171, 1
      %p175 = scmp.eq.s32.totalorder %s20, 1
      %p176 = scmp.ne.s32.totalorder %s171, %s173
      %p177 = scmp.eq.s32.totalorder %s20, 0
      %p178 = por %p176, %p177
      %p179 = scmp.ne.s32.totalorder %s171, %s173
      %p180 = scmp.eq.s32.totalorder %s25, 1
      %p181 = por %p179, %p180
      %p182 = scmp.ne.s32.totalorder %s173, %s174
      %p183 = scmp.eq.s32.totalorder %s25, 0
      %p184 = por %p182, %p183
      %p185 = scmp.ne.s32.totalorder %s173, %s174
      %p186 = scmp.eq.s32.totalorder %s26, 1
      %p187 = por %p185, %p186
      %p189 = scmp.ne.s32.totalorder %s174, %s188
      %p190 = scmp.eq.s32.totalorder %s26, 0
      %p191 = por %p189, %p190
      %s193 = sadd.s32 %s192, 1
      %p196 = scmp.eq.s32.totalorder %s20, 1
      %p197 = scmp.ne.s32.totalorder %s192, %s194
      %p198 = scmp.eq.s32.totalorder %s20, 0
      %p199 = por %p197, %p198
      %p200 = scmp.ne.s32.totalorder %s192, %s194
      %p201 = scmp.eq.s32.totalorder %s25, 1
      %p202 = por %p200, %p201
      %p203 = scmp.ne.s32.totalorder %s194, %s195
      %p204 = scmp.eq.s32.totalorder %s25, 0
      %p205 = por %p203, %p204
      %p206 = scmp.ne.s32.totalorder %s194, %s195
      %p207 = scmp.eq.s32.totalorder %s26, 1
      %p208 = por %p206, %p207
      %p210 = scmp.ne.s32.totalorder %s195, %s209
      %p211 = scmp.eq.s32.totalorder %s26, 0
      %p212 = por %p210, %p211
      %s213 = ssub.s32 %s27, %s39
      %s214 = ssub.s32 %s28, %s35
      %s215 = sor.u32 %s213, %s214
      %p216 = scmp.eq.s32.totalorder %s215, 0
      %s218 = sadd.s32 %s217, 1
      %s219 = scalar_select %p216, %s217, %s218
      %p222 = pneg %p216
      %p223 = scmp.eq.s32.totalorder %s20, 1
      %p224 = por %p222, %p223
      %p225 = scmp.ne.s32.totalorder %s217, %s220
      %p226 = scmp.eq.s32.totalorder %s20, 0
      %p227 = por %p225, %p226
      %p228 = scmp.ne.s32.totalorder %s217, %s220
      %p229 = scmp.eq.s32.totalorder %s25, 1
      %p230 = por %p228, %p229
      %p231 = scmp.ne.s32.totalorder %s220, %s221
      %p232 = scmp.eq.s32.totalorder %s25, 0
      %p233 = por %p231, %p232
      %p234 = scmp.ne.s32.totalorder %s220, %s221
      %p235 = scmp.eq.s32.totalorder %s26, 1
      %p236 = por %p234, %p235
      %p238 = scmp.ne.s32.totalorder %s221, %s237
      %p239 = scmp.eq.s32.totalorder %s26, 0
      %p240 = por %p238, %p239
      %s241 = ssub.s32 %s27, %s39
      %s242 = ssub.s32 %s28, %s35
      %s243 = sor.u32 %s241, %s242
      %p244 = scmp.eq.s32.totalorder %s243, 0
      %s246 = sadd.s32 %s245, 1
      %s247 = scalar_select %p244, %s245, %s246
      %p250 = pneg %p244
      %p251 = scmp.eq.s32.totalorder %s20, 1
      %p252 = por %p250, %p251
      %p253 = scmp.ne.s32.totalorder %s245, %s248
      %p254 = scmp.eq.s32.totalorder %s20, 0
      %p255 = por %p253, %p254
      %p256 = scmp.ne.s32.totalorder %s245, %s248
      %p257 = scmp.eq.s32.totalorder %s25, 1
      %p258 = por %p256, %p257
      %p259 = scmp.ne.s32.totalorder %s248, %s249
      %p260 = scmp.eq.s32.totalorder %s25, 0
      %p261 = por %p259, %p260
      %p262 = scmp.ne.s32.totalorder %s248, %s249
      %p263 = scmp.eq.s32.totalorder %s26, 1
      %p264 = por %p262, %p263
      %p266 = scmp.ne.s32.totalorder %s249, %s265
      %p267 = scmp.eq.s32.totalorder %s26, 0
      %p268 = por %p266, %p267
      %p269 = scmp.le.s32.totalorder 1, %s20
      %p270 = scmp.lt.s32.totalorder %s20, 3
      %p271 = pnand %p269, %p270
      %p272 = pneg %p271
      // Predicated region
      $region9: #{self_attn_pallas.1} parent=5 // pred_check
        _
      $region10: #{self_attn_pallas.1} parent=5 // pred_check_branch
        %274 = sbr.rel (%p271) target = $region12
      $region11: #{self_attn_pallas.1} parent=5 // pred_region
        %s275 = ssub.s32 %s20, 1
        // Predicated region
        $region13: #{self_attn_pallas.1} parent=11 // pred_check
          %p276 = pneg %p79
        $region14: #{self_attn_pallas.1} parent=11 // pred_check_branch
          %278 = sbr.rel (%p276) target = $region16
        $region15: #{self_attn_pallas.1} parent=11 // pred_region
          _
        $region16: #{self_attn_pallas.1} parent=11 // pred_fallthru
          _
        // Predicated region
        $region17: #{self_attn_pallas.1} parent=11 // pred_check
          %p279 = pneg %p100
        $region18: #{self_attn_pallas.1} parent=11 // pred_check_branch
          %281 = sbr.rel (%p279) target = $region20
        $region19: #{self_attn_pallas.1} parent=11 // pred_region
          _
        $region20: #{self_attn_pallas.1} parent=11 // pred_fallthru
          _
        // Predicated region
        $region21: #{self_attn_pallas.1} parent=11 // pred_check
          %p282 = pneg %p121
        $region22: #{self_attn_pallas.1} parent=11 // pred_check_branch
          %284 = sbr.rel (%p282) target = $region24
        $region23: #{self_attn_pallas.1} parent=11 // pred_region
          _
        $region24: #{self_attn_pallas.1} parent=11 // pred_fallthru
          _
        // Predicated region
        $region25: #{self_attn_pallas.1} parent=11 // pred_check
          %p285 = pneg %p142
        $region26: #{self_attn_pallas.1} parent=11 // pred_check_branch
          %287 = sbr.rel (%p285) target = $region28
        $region27: #{self_attn_pallas.1} parent=11 // pred_region
          _
        $region28: #{self_attn_pallas.1} parent=11 // pred_fallthru
          _
        // Predicated region
        $region29: #{self_attn_pallas.1} parent=11 // pred_check
          %p288 = pneg %p163
        $region30: #{self_attn_pallas.1} parent=11 // pred_check_branch
          %290 = sbr.rel (%p288) target = $region32
        $region31: #{self_attn_pallas.1} parent=11 // pred_region
          _
        $region32: #{self_attn_pallas.1} parent=11 // pred_fallthru
          _
        // Predicated region
        $region33: #{self_attn_pallas.1} parent=11 // pred_check
          %p291 = pneg %p184
        $region34: #{self_attn_pallas.1} parent=11 // pred_check_branch
          %293 = sbr.rel (%p291) target = $region36
        $region35: #{self_attn_pallas.1} parent=11 // pred_region
          _
        $region36: #{self_attn_pallas.1} parent=11 // pred_fallthru
          _
        // Predicated region
        $region37: #{self_attn_pallas.1} parent=11 // pred_check
          %p294 = pneg %p205
        $region38: #{self_attn_pallas.1} parent=11 // pred_check_branch
          %296 = sbr.rel (%p294) target = $region40
        $region39: #{self_attn_pallas.1} parent=11 // pred_region
          _
        $region40: #{self_attn_pallas.1} parent=11 // pred_fallthru
          _
      $region12: #{self_attn_pallas.1} parent=5 // pred_fallthru
        _
      %p297 = scmp.lt.s32.totalorder %s20, 2
      // Predicated region
      $region41: #{self_attn_pallas.1} parent=5 // pred_check
        %p298 = pneg %p297
      $region42: #{self_attn_pallas.1} parent=5 // pred_check_branch
        %300 = sbr.rel (%p298) target = $region44
      $region43: #{self_attn_pallas.1} parent=5 // pred_region
        // Predicated region
        $region45: #{self_attn_pallas.1} parent=43 // pred_check
          %p301 = pneg %p52
        $region46: #{self_attn_pallas.1} parent=43 // pred_check_branch
          %303 = sbr.rel (%p301) target = $region48
        $region47: #{self_attn_pallas.1} parent=43 // pred_region
          %p304 = scmp.lt.s32.totalorder %s27, 1
          %s305 = scalar_select %p304, %s27, 1
          %s306 = smul.addr %s305, 8
          %s307 = smul.addr %s306, 8
          %s308 = scalar_lea.vmem %s0, %s307
        $region48: #{self_attn_pallas.1} parent=43 // pred_fallthru
          _
      $region44: #{self_attn_pallas.1} parent=5 // pred_fallthru
        _
      %p309 = scmp.le.s32.totalorder 1, %s20
      %p310 = scmp.lt.s32.totalorder %s20, 3
      %p311 = pnand %p309, %p310
      %p312 = pneg %p311
      // Predicated region
      $region49: #{self_attn_pallas.1} parent=5 // pred_check
        _
      $region50: #{self_attn_pallas.1} parent=5 // pred_check_branch
        %314 = sbr.rel (%p311) target = $region52
      $region51: #{self_attn_pallas.1} parent=5 // pred_region
        %s315 = ssub.s32 %s20, 1
        %p316 = scmp.lt.s32.totalorder %s29, 1
        %s317 = scalar_select %p316, %s29, 1
        %s318 = smul.addr %s317, 8
        %s319 = smul.addr %s318, 8
        %s320 = scalar_lea.vmem %s0, %s319
        %p321 = pneg %p58
        %p322 = pneg %p55
        %p323 = pneg %p79
        %p324 = pneg %p76
        %p325 = pneg %p100
        %p326 = pneg %p97
        %p327 = pneg %p121
        %p328 = pneg %p118
        %p329 = pneg %p142
        %p330 = pneg %p139
        %p331 = pneg %p163
        %p332 = pneg %p160
        %p333 = pneg %p184
        %p334 = pneg %p181
        %p335 = pneg %p205
        %p336 = pneg %p202
        %p337 = pneg %p233
        %p338 = pneg %p230
        %s339 = smul.u32 8, %s30
        %p340 = scmp.lt.s32.totalorder %s29, 1
        %s341 = scalar_select %p340, %s29, 1
        %p342 = scmp.lt.s32.totalorder %s339, 7
        %s343 = scalar_select %p342, %s339, 7
        %s344 = smul.addr %s341, 8
        %s345 = sadd.s32 %s343, %s344
        %s346 = smul.addr %s345, 8
        %s347 = scalar_lea.vmem %s8, %s346
        %p348 = pneg %p261
        %p349 = pneg %p258
        %s350 = sand.u32 %s248, 1
        %s351 = scalar_lea.sflag [#allocation6], %s350
        %s352 = sand.u32 %s248, 1
        %s353 = smul.addr %s352, 64
        %s354 = scalar_lea.vmem [#allocation5], %s353
        %p355 = scmp.lt.s32.totalorder %s29, 1
        %s356 = scalar_select %p355, %s29, 1
        %s357 = smul.addr %s356, 8
        %s358 = smul.addr %s357, 8
        %s359 = scalar_lea.vmem %s0, %s358
        %s360 = smul.u32 8, %s30
        %p361 = scmp.lt.s32.totalorder %s29, 1
        %s362 = scalar_select %p361, %s29, 1
        %p363 = scmp.lt.s32.totalorder %s360, 7
        %s364 = scalar_select %p363, %s360, 7
        %s365 = smul.addr %s362, 8
        %s366 = sadd.s32 %s364, %s365
        %s367 = smul.addr %s366, 8
        %s368 = scalar_lea.vmem %s8, %s367
        %s369 = smul.u32 8, %s30
        %s370 = smul.u32 8, %s30
        %p372 = scmp.eq.s32.totalorder %s30, 0
        // Predicated region
        $region53: #{self_attn_pallas.1} parent=51 // pred_check
          %p373 = pneg %p372
        $region54: #{self_attn_pallas.1} parent=51 // pred_check_branch
          %375 = sbr.rel (%p373) target = $region56
        $region55: #{self_attn_pallas.1} parent=51 // pred_region
          %v376 = vld [vmem:[%s359] sm:$0xff]
          %v377 = vld [vmem:[%s359 + $0x8] sm:$0xff]
          %v378 = vld [vmem:[%s359 + $0x10] sm:$0xff]
          %v379 = vld [vmem:[%s359 + $0x18] sm:$0xff]
          %v380 = vld [vmem:[%s359 + $0x20] sm:$0xff]
          %v381 = vld [vmem:[%s359 + $0x28] sm:$0xff]
          %v382 = vld [vmem:[%s359 + $0x30] sm:$0xff]
          %v383 = vld [vmem:[%s359 + $0x38] sm:$0xff]
          %v384 = vpack.c.bf16 %v377, %v376
          %v385 = vpack.c.bf16 %v379, %v378
          %v386 = vpack.c.bf16 %v381, %v380
          %v387 = vpack.c.bf16 %v383, %v382
          %v388 = vld [vmem:[%s2] sm:$0xf]
          %v389 = vld [vmem:[%s2 + $0x4] sm:$0xf]
          %v390 = vld [vmem:[%s2 + $0x8] sm:$0xf]
          %v391 = vld [vmem:[%s2 + $0xc] sm:$0xf]
          %v392 = vld [vmem:[%s2 + $0x10] sm:$0xf]
          %v393 = vld [vmem:[%s2 + $0x14] sm:$0xf]
          %v394 = vld [vmem:[%s2 + $0x18] sm:$0xf]
          %v395 = vld [vmem:[%s2 + $0x1c] sm:$0xf]
          %v396 = vld [vmem:[%s2 + $0x20] sm:$0xf]
          %v397 = vld [vmem:[%s2 + $0x24] sm:$0xf]
          %v398 = vld [vmem:[%s2 + $0x28] sm:$0xf]
          %v399 = vld [vmem:[%s2 + $0x2c] sm:$0xf]
          %v400 = vld [vmem:[%s2 + $0x30] sm:$0xf]
          %v401 = vld [vmem:[%s2 + $0x34] sm:$0xf]
          %v402 = vld [vmem:[%s2 + $0x38] sm:$0xf]
          %v403 = vld [vmem:[%s2 + $0x3c] sm:$0xf]
          %v404 = vld [vmem:[%s5] sm:$0x1]
          %v406 = vperm.slane %v404, 0
          %v424 = vunpack.c.l.b16 %v388
          %v425 = vunpack.c.l.b16 %v389
          %v426 = vunpack.c.l.b16 %v390
          %v427 = vunpack.c.l.b16 %v391
          %v428 = vunpack.c.l.b16 %v392
          %v429 = vunpack.c.l.b16 %v393
          %v430 = vunpack.c.l.b16 %v394
          %v431 = vunpack.c.l.b16 %v395
          %v432 = vunpack.c.l.b16 %v396
          %v433 = vunpack.c.l.b16 %v397
          %v434 = vunpack.c.l.b16 %v398
          %v435 = vunpack.c.l.b16 %v399
          %v436 = vunpack.c.l.b16 %v400
          %v437 = vunpack.c.l.b16 %v401
          %v438 = vunpack.c.l.b16 %v402
          %v439 = vunpack.c.l.b16 %v403
          %v440 = vpack.c.b16 %v425, %v424
          %v441 = vpack.c.b16 %v427, %v426
          %v442 = vpack.c.b16 %v429, %v428
          %v443 = vpack.c.b16 %v431, %v430
          %v444 = vpack.c.b16 %v433, %v432
          %v445 = vpack.c.b16 %v435, %v434
          %v446 = vpack.c.b16 %v437, %v436
          %v447 = vpack.c.b16 %v439, %v438
          %456 = vmatpush.bf16.msra.mxu0 %v447
          %457 = vmatpush.bf16.msra.mxu0 %v446
          %458 = vmatpush.bf16.msra.mxu0 %v445
          %459 = vmatpush.bf16.msra.mxu0 %v444
          %460 = vmatpush.bf16.msra.mxu0 %v443
          %461 = vmatpush.bf16.msra.mxu0 %v442
          %462 = vmatpush.bf16.msra.mxu0 %v441
          %463 = vmatpush.bf16.msra.mxu0 %v440
          %464 = vmatmul.bf16.gmra.mxu0 %v384
          %v465 = vpop.f32.mrf.mxu0
          %v466 = vadd.f32 %v406, %v465
          %v467 = vpop.f32.mrf.mxu0
          %v468 = vadd.f32 %v406, %v467
          %469 = vmatmul.bf16.gmra.mxu0 %v385
          %v470 = vpop.f32.mrf.mxu0
          %v471 = vadd.f32 %v406, %v470
          %v472 = vpop.f32.mrf.mxu0
          %v473 = vadd.f32 %v406, %v472
          %474 = vmatmul.bf16.gmra.mxu0 %v386
          %v475 = vpop.f32.mrf.mxu0
          %v476 = vadd.f32 %v406, %v475
          %v477 = vpop.f32.mrf.mxu0
          %v478 = vadd.f32 %v406, %v477
          %479 = vmatmul.bf16.gmra.mxu0 %v387
          %v480 = vpop.f32.mrf.mxu0
          %v481 = vadd.f32 %v406, %v480
          %v482 = vpop.f32.mrf.mxu0
          %v483 = vadd.f32 %v406, %v482
          %484 = vdwg.mxu0
          %v485 = vld [vmem:[%s3] sm:$0xf]
          %v486 = vld [vmem:[%s3 + $0x4] sm:$0xf]
          %v487 = vld [vmem:[%s3 + $0x8] sm:$0xf]
          %v488 = vld [vmem:[%s3 + $0xc] sm:$0xf]
          %v489 = vld [vmem:[%s3 + $0x10] sm:$0xf]
          %v490 = vld [vmem:[%s3 + $0x14] sm:$0xf]
          %v491 = vld [vmem:[%s3 + $0x18] sm:$0xf]
          %v492 = vld [vmem:[%s3 + $0x1c] sm:$0xf]
          %v493 = vld [vmem:[%s3 + $0x20] sm:$0xf]
          %v494 = vld [vmem:[%s3 + $0x24] sm:$0xf]
          %v495 = vld [vmem:[%s3 + $0x28] sm:$0xf]
          %v496 = vld [vmem:[%s3 + $0x2c] sm:$0xf]
          %v497 = vld [vmem:[%s3 + $0x30] sm:$0xf]
          %v498 = vld [vmem:[%s3 + $0x34] sm:$0xf]
          %v499 = vld [vmem:[%s3 + $0x38] sm:$0xf]
          %v500 = vld [vmem:[%s3 + $0x3c] sm:$0xf]
          %v501 = vld [vmem:[%s6] sm:$0x1]
          %v503 = vperm.slane %v501, 0
          %v521 = vunpack.c.l.b16 %v485
          %v522 = vunpack.c.l.b16 %v486
          %v523 = vunpack.c.l.b16 %v487
          %v524 = vunpack.c.l.b16 %v488
          %v525 = vunpack.c.l.b16 %v489
          %v526 = vunpack.c.l.b16 %v490
          %v527 = vunpack.c.l.b16 %v491
          %v528 = vunpack.c.l.b16 %v492
          %v529 = vunpack.c.l.b16 %v493
          %v530 = vunpack.c.l.b16 %v494
          %v531 = vunpack.c.l.b16 %v495
          %v532 = vunpack.c.l.b16 %v496
          %v533 = vunpack.c.l.b16 %v497
          %v534 = vunpack.c.l.b16 %v498
          %v535 = vunpack.c.l.b16 %v499
          %v536 = vunpack.c.l.b16 %v500
          %v537 = vpack.c.b16 %v522, %v521
          %v538 = vpack.c.b16 %v524, %v523
          %v539 = vpack.c.b16 %v526, %v525
          %v540 = vpack.c.b16 %v528, %v527
          %v541 = vpack.c.b16 %v530, %v529
          %v542 = vpack.c.b16 %v532, %v531
          %v543 = vpack.c.b16 %v534, %v533
          %v544 = vpack.c.b16 %v536, %v535
          %553 = vmatpush.bf16.msra.mxu0 %v544
          %554 = vmatpush.bf16.msra.mxu0 %v543
          %555 = vmatpush.bf16.msra.mxu0 %v542
          %556 = vmatpush.bf16.msra.mxu0 %v541
          %557 = vmatpush.bf16.msra.mxu0 %v540
          %558 = vmatpush.bf16.msra.mxu0 %v539
          %559 = vmatpush.bf16.msra.mxu0 %v538
          %560 = vmatpush.bf16.msra.mxu0 %v537
          %561 = vmatmul.bf16.gmra.mxu0 %v384
          %v562 = vpop.f32.mrf.mxu0
          %v563 = vadd.f32 %v503, %v562
          %v564 = vpop.f32.mrf.mxu0
          %v565 = vadd.f32 %v503, %v564
          %566 = vmatmul.bf16.gmra.mxu0 %v385
          %v567 = vpop.f32.mrf.mxu0
          %v568 = vadd.f32 %v503, %v567
          %v569 = vpop.f32.mrf.mxu0
          %v570 = vadd.f32 %v503, %v569
          %571 = vmatmul.bf16.gmra.mxu0 %v386
          %v572 = vpop.f32.mrf.mxu0
          %v573 = vadd.f32 %v503, %v572
          %v574 = vpop.f32.mrf.mxu0
          %v575 = vadd.f32 %v503, %v574
          %576 = vmatmul.bf16.gmra.mxu0 %v387
          %v577 = vpop.f32.mrf.mxu0
          %v578 = vadd.f32 %v503, %v577
          %v579 = vpop.f32.mrf.mxu0
          %v580 = vadd.f32 %v503, %v579
          %581 = vdwg.mxu0
          %v582 = vpack.c.bf16 %v466, %v466
          %v583 = vpack.c.bf16 %v468, %v468
          %v584 = vpack.c.bf16 %v471, %v471
          %v585 = vpack.c.bf16 %v473, %v473
          %v586 = vpack.c.bf16 %v476, %v476
          %v587 = vpack.c.bf16 %v478, %v478
          %v588 = vpack.c.bf16 %v481, %v481
          %v589 = vpack.c.bf16 %v483, %v483
          %590 = vst [vmem:[#allocation2] sm:$0xf] %v582
          %591 = vst [vmem:[#allocation2 + $0x4] sm:$0xf] %v583
          %592 = vst [vmem:[#allocation2 + $0x8] sm:$0xf] %v584
          %593 = vst [vmem:[#allocation2 + $0xc] sm:$0xf] %v585
          %594 = vst [vmem:[#allocation2 + $0x10] sm:$0xf] %v586
          %595 = vst [vmem:[#allocation2 + $0x14] sm:$0xf] %v587
          %596 = vst [vmem:[#allocation2 + $0x18] sm:$0xf] %v588
          %597 = vst [vmem:[#allocation2 + $0x1c] sm:$0xf] %v589
          %v598 = vpack.c.bf16 %v563, %v563
          %v599 = vpack.c.bf16 %v565, %v565
          %v600 = vpack.c.bf16 %v568, %v568
          %v601 = vpack.c.bf16 %v570, %v570
          %v602 = vpack.c.bf16 %v573, %v573
          %v603 = vpack.c.bf16 %v575, %v575
          %v604 = vpack.c.bf16 %v578, %v578
          %v605 = vpack.c.bf16 %v580, %v580
          %606 = vst [vmem:[#allocation3] sm:$0xf] %v598
          %607 = vst [vmem:[#allocation3 + $0x4] sm:$0xf] %v599
          %608 = vst [vmem:[#allocation3 + $0x8] sm:$0xf] %v600
          %609 = vst [vmem:[#allocation3 + $0xc] sm:$0xf] %v601
          %610 = vst [vmem:[#allocation3 + $0x10] sm:$0xf] %v602
          %611 = vst [vmem:[#allocation3 + $0x14] sm:$0xf] %v603
          %612 = vst [vmem:[#allocation3 + $0x18] sm:$0xf] %v604
          %613 = vst [vmem:[#allocation3 + $0x1c] sm:$0xf] %v605
        $region56: #{self_attn_pallas.1} parent=51 // pred_fallthru
          _
        %s614 = smul.u32 %s30, 64
        %s615 = scalar_lea.vmem %s359, %s614
        %v616 = vld [vmem:[%s615] sm:$0xff]
        %v617 = vld [vmem:[%s615 + $0x8] sm:$0xff]
        %v618 = vld [vmem:[%s615 + $0x10] sm:$0xff]
        %v619 = vld [vmem:[%s615 + $0x18] sm:$0xff]
        %v620 = vld [vmem:[%s615 + $0x20] sm:$0xff]
        %v621 = vld [vmem:[%s615 + $0x28] sm:$0xff]
        %v622 = vld [vmem:[%s615 + $0x30] sm:$0xff]
        %v623 = vld [vmem:[%s615 + $0x38] sm:$0xff]
        %v624 = vpack.c.bf16 %v617, %v616
        %v625 = vpack.c.bf16 %v619, %v618
        %v626 = vpack.c.bf16 %v621, %v620
        %v627 = vpack.c.bf16 %v623, %v622
        %v628 = vld [vmem:[%s1] sm:$0xf]
        %v629 = vld [vmem:[%s1 + $0x4] sm:$0xf]
        %v630 = vld [vmem:[%s1 + $0x8] sm:$0xf]
        %v631 = vld [vmem:[%s1 + $0xc] sm:$0xf]
        %v632 = vld [vmem:[%s1 + $0x10] sm:$0xf]
        %v633 = vld [vmem:[%s1 + $0x14] sm:$0xf]
        %v634 = vld [vmem:[%s1 + $0x18] sm:$0xf]
        %v635 = vld [vmem:[%s1 + $0x1c] sm:$0xf]
        %v636 = vld [vmem:[%s1 + $0x20] sm:$0xf]
        %v637 = vld [vmem:[%s1 + $0x24] sm:$0xf]
        %v638 = vld [vmem:[%s1 + $0x28] sm:$0xf]
        %v639 = vld [vmem:[%s1 + $0x2c] sm:$0xf]
        %v640 = vld [vmem:[%s1 + $0x30] sm:$0xf]
        %v641 = vld [vmem:[%s1 + $0x34] sm:$0xf]
        %v642 = vld [vmem:[%s1 + $0x38] sm:$0xf]
        %v643 = vld [vmem:[%s1 + $0x3c] sm:$0xf]
        %v644 = vld [vmem:[%s4] sm:$0x1]
        %v646 = vperm.slane %v644, 0
        %v664 = vunpack.c.l.b16 %v628
        %v665 = vunpack.c.l.b16 %v629
        %v666 = vunpack.c.l.b16 %v630
        %v667 = vunpack.c.l.b16 %v631
        %v668 = vunpack.c.l.b16 %v632
        %v669 = vunpack.c.l.b16 %v633
        %v670 = vunpack.c.l.b16 %v634
        %v671 = vunpack.c.l.b16 %v635
        %v672 = vunpack.c.l.b16 %v636
        %v673 = vunpack.c.l.b16 %v637
        %v674 = vunpack.c.l.b16 %v638
        %v675 = vunpack.c.l.b16 %v639
        %v676 = vunpack.c.l.b16 %v640
        %v677 = vunpack.c.l.b16 %v641
        %v678 = vunpack.c.l.b16 %v642
        %v679 = vunpack.c.l.b16 %v643
        %v680 = vpack.c.b16 %v665, %v664
        %v681 = vpack.c.b16 %v667, %v666
        %v682 = vpack.c.b16 %v669, %v668
        %v683 = vpack.c.b16 %v671, %v670
        %v684 = vpack.c.b16 %v673, %v672
        %v685 = vpack.c.b16 %v675, %v674
        %v686 = vpack.c.b16 %v677, %v676
        %v687 = vpack.c.b16 %v679, %v678
        %696 = vmatpush.bf16.msra.mxu0 %v687
        %697 = vmatpush.bf16.msra.mxu0 %v686
        %698 = vmatpush.bf16.msra.mxu0 %v685
        %699 = vmatpush.bf16.msra.mxu0 %v684
        %700 = vmatpush.bf16.msra.mxu0 %v683
        %701 = vmatpush.bf16.msra.mxu0 %v682
        %702 = vmatpush.bf16.msra.mxu0 %v681
        %703 = vmatpush.bf16.msra.mxu0 %v680
        %704 = vmatmul.bf16.gmra.mxu0 %v624
        %v705 = vpop.f32.mrf.mxu0
        %v706 = vadd.f32 %v646, %v705
        %v707 = vpop.f32.mrf.mxu0
        %v708 = vadd.f32 %v646, %v707
        %709 = vmatmul.bf16.gmra.mxu0 %v625
        %v710 = vpop.f32.mrf.mxu0
        %v711 = vadd.f32 %v646, %v710
        %v712 = vpop.f32.mrf.mxu0
        %v713 = vadd.f32 %v646, %v712
        %714 = vmatmul.bf16.gmra.mxu0 %v626
        %v715 = vpop.f32.mrf.mxu0
        %v716 = vadd.f32 %v646, %v715
        %v717 = vpop.f32.mrf.mxu0
        %v718 = vadd.f32 %v646, %v717
        %719 = vmatmul.bf16.gmra.mxu0 %v627
        %v720 = vpop.f32.mrf.mxu0
        %v721 = vadd.f32 %v646, %v720
        %v722 = vpop.f32.mrf.mxu0
        %v723 = vadd.f32 %v646, %v722
        %724 = vdwg.mxu0
        %v725 = vpack.c.bf16 %v708, %v706
        %v726 = vpack.c.bf16 %v713, %v711
        %v727 = vpack.c.bf16 %v718, %v716
        %v728 = vpack.c.bf16 %v723, %v721
        %v729 = vld [vmem:[#allocation2] sm:$0xf]
        %v730 = vld [vmem:[#allocation2 + $0x4] sm:$0xf]
        %v731 = vld [vmem:[#allocation2 + $0x8] sm:$0xf]
        %v732 = vld [vmem:[#allocation2 + $0xc] sm:$0xf]
        %v733 = vld [vmem:[#allocation2 + $0x10] sm:$0xf]
        %v734 = vld [vmem:[#allocation2 + $0x14] sm:$0xf]
        %v735 = vld [vmem:[#allocation2 + $0x18] sm:$0xf]
        %v736 = vld [vmem:[#allocation2 + $0x1c] sm:$0xf]
        %v745 = vunpack.c.l.b16 %v729
        %v746 = vunpack.c.l.b16 %v730
        %v747 = vunpack.c.l.b16 %v731
        %v748 = vunpack.c.l.b16 %v732
        %v749 = vunpack.c.l.b16 %v733
        %v750 = vunpack.c.l.b16 %v734
        %v751 = vunpack.c.l.b16 %v735
        %v752 = vunpack.c.l.b16 %v736
        %v753 = vpack.c.b16 %v746, %v745
        %v754 = vpack.c.b16 %v748, %v747
        %v755 = vpack.c.b16 %v750, %v749
        %v756 = vpack.c.b16 %v752, %v751
        %761 = vmatpush.bf16.xpose.msra.mxu0 0
        %762 = vmatpush.bf16.xpose.msra.mxu0 0
        %763 = vmatpush.bf16.xpose.msra.mxu0 0
        %764 = vmatpush.bf16.xpose.msra.mxu0 0
        %765 = vmatpush.bf16.xpose.msra.mxu0 %v756
        %766 = vmatpush.bf16.xpose.msra.mxu0 %v755
        %767 = vmatpush.bf16.xpose.msra.mxu0 %v754
        %768 = vmatpush.bf16.xpose.msra.mxu0 %v753
        %769 = vmatmul.bf16.gmra.mxu0 %v725
        %v770 = vpop.f32.mrf.mxu0
        %v771 = vadd.f32 0.0, %v770
        %v772 = vpop.f32.mrf.mxu0
        %v773 = vadd.f32 0.0, %v772
        %774 = vmatmul.bf16.gmra.mxu0 %v726
        %v775 = vpop.f32.mrf.mxu0
        %v776 = vadd.f32 0.0, %v775
        %v777 = vpop.f32.mrf.mxu0
        %v778 = vadd.f32 0.0, %v777
        %779 = vmatmul.bf16.gmra.mxu0 %v727
        %v780 = vpop.f32.mrf.mxu0
        %v781 = vadd.f32 0.0, %v780
        %v782 = vpop.f32.mrf.mxu0
        %v783 = vadd.f32 0.0, %v782
        %784 = vmatmul.bf16.gmra.mxu0 %v728
        %v785 = vpop.f32.mrf.mxu0
        %v786 = vadd.f32 0.0, %v785
        %v787 = vpop.f32.mrf.mxu0
        %v788 = vadd.f32 0.0, %v787
        %789 = vdwg.mxu0
        %vm790 = vcmask 523264
        %v791 = vsel %vm790, %v771, -inf
        %792 = vmax.xlane.f32.xlu0 %v791
        %v793 = vpop.xlane.xlu0 %792
        %v794 = vsel %vm790, %v773, -inf
        %795 = vmax.xlane.f32.xlu0 %v794
        %v796 = vpop.xlane.xlu0 %795
        %v797 = vsel %vm790, %v776, -inf
        %798 = vmax.xlane.f32.xlu0 %v797
        %v799 = vpop.xlane.xlu0 %798
        %v800 = vsel %vm790, %v778, -inf
        %801 = vmax.xlane.f32.xlu0 %v800
        %v802 = vpop.xlane.xlu0 %801
        %v803 = vsel %vm790, %v781, -inf
        %804 = vmax.xlane.f32.xlu0 %v803
        %v805 = vpop.xlane.xlu0 %804
        %v806 = vsel %vm790, %v783, -inf
        %807 = vmax.xlane.f32.xlu0 %v806
        %v808 = vpop.xlane.xlu0 %807
        %v809 = vsel %vm790, %v786, -inf
        %810 = vmax.xlane.f32.xlu0 %v809
        %v811 = vpop.xlane.xlu0 %810
        %v812 = vsel %vm790, %v788, -inf
        %813 = vmax.xlane.f32.xlu0 %v812
        %v814 = vpop.xlane.xlu0 %813
        %v815 = vsub.f32 %v771, %v793
        %v816 = vsub.f32 %v773, %v796
        %v817 = vsub.f32 %v776, %v799
        %v818 = vsub.f32 %v778, %v802
        %v819 = vsub.f32 %v781, %v805
        %v820 = vsub.f32 %v783, %v808
        %v821 = vsub.f32 %v786, %v811
        %v822 = vsub.f32 %v788, %v814
        %v823 = vmul.f32 %v815, 1.442695
        %v824 = vpow.pop %v823
        %v825 = vmul.f32 %v816, 1.442695
        %v826 = vpow.pop %v825
        %v827 = vmul.f32 %v817, 1.442695
        %v828 = vpow.pop %v827
        %v829 = vmul.f32 %v818, 1.442695
        %v830 = vpow.pop %v829
        %v831 = vmul.f32 %v819, 1.442695
        %v832 = vpow.pop %v831
        %v833 = vmul.f32 %v820, 1.442695
        %v834 = vpow.pop %v833
        %v835 = vmul.f32 %v821, 1.442695
        %v836 = vpow.pop %v835
        %v837 = vmul.f32 %v822, 1.442695
        %v838 = vpow.pop %v837
        %v839 = vsel %vm790, %v824, 0.0
        %840 = vadd.xlane.f32.xlu0 %v839
        %v841 = vpop.xlane.xlu0 %840
        %v842 = vsel %vm790, %v826, 0.0
        %843 = vadd.xlane.f32.xlu0 %v842
        %v844 = vpop.xlane.xlu0 %843
        %v845 = vsel %vm790, %v828, 0.0
        %846 = vadd.xlane.f32.xlu0 %v845
        %v847 = vpop.xlane.xlu0 %846
        %v848 = vsel %vm790, %v830, 0.0
        %849 = vadd.xlane.f32.xlu0 %v848
        %v850 = vpop.xlane.xlu0 %849
        %v851 = vsel %vm790, %v832, 0.0
        %852 = vadd.xlane.f32.xlu0 %v851
        %v853 = vpop.xlane.xlu0 %852
        %v854 = vsel %vm790, %v834, 0.0
        %855 = vadd.xlane.f32.xlu0 %v854
        %v856 = vpop.xlane.xlu0 %855
        %v857 = vsel %vm790, %v836, 0.0
        %858 = vadd.xlane.f32.xlu0 %v857
        %v859 = vpop.xlane.xlu0 %858
        %v860 = vsel %vm790, %v838, 0.0
        %861 = vadd.xlane.f32.xlu0 %v860
        %v862 = vpop.xlane.xlu0 %861
        %v863 = vrcp.pop %v841
        %v864 = vmul.f32 %v841, %v863
        %v865 = vsub.f32 1.0, %v864
        %v866 = vmul.f32 %v863, %v865
        %v867 = vadd.f32 %v863, %v866
        %vm868 = vweird.f32 %v841
        %vm869 = vweird.f32 %v863
        %vm870 = vmor %vm868, %vm869
        %v871 = vsel %vm870, %v863, %v867
        %v872 = vand.u32 2147483647, %v841
        %vm873 = vcmp.eq.f32.partialorder %v872, 8.507059e+37
        %v874 = vand.u32 %v841, 2147483648
        %v875 = vor.u32 1.1754944e-38, %v874
        %v876 = vsel %vm873, %v875, %v871
        %v877 = vmul.f32 1.0, %v876
        %v878 = vrcp.pop %v844
        %v879 = vmul.f32 %v844, %v878
        %v880 = vsub.f32 1.0, %v879
        %v881 = vmul.f32 %v878, %v880
        %v882 = vadd.f32 %v878, %v881
        %vm883 = vweird.f32 %v844
        %vm884 = vweird.f32 %v878
        %vm885 = vmor %vm883, %vm884
        %v886 = vsel %vm885, %v878, %v882
        %v887 = vand.u32 2147483647, %v844
        %vm888 = vcmp.eq.f32.partialorder %v887, 8.507059e+37
        %v889 = vand.u32 %v844, 2147483648
        %v890 = vor.u32 1.1754944e-38, %v889
        %v891 = vsel %vm888, %v890, %v886
        %v892 = vmul.f32 1.0, %v891
        %v893 = vrcp.pop %v847
        %v894 = vmul.f32 %v847, %v893
        %v895 = vsub.f32 1.0, %v894
        %v896 = vmul.f32 %v893, %v895
        %v897 = vadd.f32 %v893, %v896
        %vm898 = vweird.f32 %v847
        %vm899 = vweird.f32 %v893
        %vm900 = vmor %vm898, %vm899
        %v901 = vsel %vm900, %v893, %v897
        %v902 = vand.u32 2147483647, %v847
        %vm903 = vcmp.eq.f32.partialorder %v902, 8.507059e+37
        %v904 = vand.u32 %v847, 2147483648
        %v905 = vor.u32 1.1754944e-38, %v904
        %v906 = vsel %vm903, %v905, %v901
        %v907 = vmul.f32 1.0, %v906
        %v908 = vrcp.pop %v850
        %v909 = vmul.f32 %v850, %v908
        %v910 = vsub.f32 1.0, %v909
        %v911 = vmul.f32 %v908, %v910
        %v912 = vadd.f32 %v908, %v911
        %vm913 = vweird.f32 %v850
        %vm914 = vweird.f32 %v908
        %vm915 = vmor %vm913, %vm914
        %v916 = vsel %vm915, %v908, %v912
        %v917 = vand.u32 2147483647, %v850
        %vm918 = vcmp.eq.f32.partialorder %v917, 8.507059e+37
        %v919 = vand.u32 %v850, 2147483648
        %v920 = vor.u32 1.1754944e-38, %v919
        %v921 = vsel %vm918, %v920, %v916
        %v922 = vmul.f32 1.0, %v921
        %v923 = vrcp.pop %v853
        %v924 = vmul.f32 %v853, %v923
        %v925 = vsub.f32 1.0, %v924
        %v926 = vmul.f32 %v923, %v925
        %v927 = vadd.f32 %v923, %v926
        %vm928 = vweird.f32 %v853
        %vm929 = vweird.f32 %v923
        %vm930 = vmor %vm928, %vm929
        %v931 = vsel %vm930, %v923, %v927
        %v932 = vand.u32 2147483647, %v853
        %vm933 = vcmp.eq.f32.partialorder %v932, 8.507059e+37
        %v934 = vand.u32 %v853, 2147483648
        %v935 = vor.u32 1.1754944e-38, %v934
        %v936 = vsel %vm933, %v935, %v931
        %v937 = vmul.f32 1.0, %v936
        %v938 = vrcp.pop %v856
        %v939 = vmul.f32 %v856, %v938
        %v940 = vsub.f32 1.0, %v939
        %v941 = vmul.f32 %v938, %v940
        %v942 = vadd.f32 %v938, %v941
        %vm943 = vweird.f32 %v856
        %vm944 = vweird.f32 %v938
        %vm945 = vmor %vm943, %vm944
        %v946 = vsel %vm945, %v938, %v942
        %v947 = vand.u32 2147483647, %v856
        %vm948 = vcmp.eq.f32.partialorder %v947, 8.507059e+37
        %v949 = vand.u32 %v856, 2147483648
        %v950 = vor.u32 1.1754944e-38, %v949
        %v951 = vsel %vm948, %v950, %v946
        %v952 = vmul.f32 1.0, %v951
        %v953 = vrcp.pop %v859
        %v954 = vmul.f32 %v859, %v953
        %v955 = vsub.f32 1.0, %v954
        %v956 = vmul.f32 %v953, %v955
        %v957 = vadd.f32 %v953, %v956
        %vm958 = vweird.f32 %v859
        %vm959 = vweird.f32 %v953
        %vm960 = vmor %vm958, %vm959
        %v961 = vsel %vm960, %v953, %v957
        %v962 = vand.u32 2147483647, %v859
        %vm963 = vcmp.eq.f32.partialorder %v962, 8.507059e+37
        %v964 = vand.u32 %v859, 2147483648
        %v965 = vor.u32 1.1754944e-38, %v964
        %v966 = vsel %vm963, %v965, %v961
        %v967 = vmul.f32 1.0, %v966
        %v968 = vrcp.pop %v862
        %v969 = vmul.f32 %v862, %v968
        %v970 = vsub.f32 1.0, %v969
        %v971 = vmul.f32 %v968, %v970
        %v972 = vadd.f32 %v968, %v971
        %vm973 = vweird.f32 %v862
        %vm974 = vweird.f32 %v968
        %vm975 = vmor %vm973, %vm974
        %v976 = vsel %vm975, %v968, %v972
        %v977 = vand.u32 2147483647, %v862
        %vm978 = vcmp.eq.f32.partialorder %v977, 8.507059e+37
        %v979 = vand.u32 %v862, 2147483648
        %v980 = vor.u32 1.1754944e-38, %v979
        %v981 = vsel %vm978, %v980, %v976
        %v982 = vmul.f32 1.0, %v981
        %v983 = vmul.f32 %v824, %v877
        %v984 = vmul.f32 %v826, %v892
        %v985 = vmul.f32 %v828, %v907
        %v986 = vmul.f32 %v830, %v922
        %v987 = vmul.f32 %v832, %v937
        %v988 = vmul.f32 %v834, %v952
        %v989 = vmul.f32 %v836, %v967
        %v990 = vmul.f32 %v838, %v982
        %v991 = vpack.c.bf16 %v984, %v983
        %v992 = vpack.c.bf16 %v986, %v985
        %v993 = vpack.c.bf16 %v988, %v987
        %v994 = vpack.c.bf16 %v990, %v989
        %v995 = vld [vmem:[#allocation3] sm:$0xf]
        %v996 = vld [vmem:[#allocation3 + $0x4] sm:$0xf]
        %v997 = vld [vmem:[#allocation3 + $0x8] sm:$0xf]
        %v998 = vld [vmem:[#allocation3 + $0xc] sm:$0xf]
        %v999 = vld [vmem:[#allocation3 + $0x10] sm:$0xf]
        %v1000 = vld [vmem:[#allocation3 + $0x14] sm:$0xf]
        %v1001 = vld [vmem:[#allocation3 + $0x18] sm:$0xf]
        %v1002 = vld [vmem:[#allocation3 + $0x1c] sm:$0xf]
        %v1011 = vunpack.c.l.b16 %v995
        %v1012 = vunpack.c.l.b16 %v996
        %v1013 = vunpack.c.l.b16 %v997
        %v1014 = vunpack.c.l.b16 %v998
        %v1015 = vunpack.c.l.b16 %v999
        %v1016 = vunpack.c.l.b16 %v1000
        %v1017 = vunpack.c.l.b16 %v1001
        %v1018 = vunpack.c.l.b16 %v1002
        %v1019 = vpack.c.b16 %v1012, %v1011
        %v1020 = vpack.c.b16 %v1014, %v1013
        %v1021 = vpack.c.b16 %v1016, %v1015
        %v1022 = vpack.c.b16 %v1018, %v1017
        %v1028 = vsel %vm790, %v991, 0
        %v1031 = vsel %vm790, %v992, 0
        %v1034 = vsel %vm790, %v993, 0
        %v1037 = vsel %vm790, %v994, 0
        %1039 = vmatpush.bf16.msra.mxu0 0
        %1040 = vmatpush.bf16.msra.mxu0 0
        %1041 = vmatpush.bf16.msra.mxu0 0
        %1042 = vmatpush.bf16.msra.mxu0 0
        %1043 = vmatpush.bf16.msra.mxu0 %v1022
        %1044 = vmatpush.bf16.msra.mxu0 %v1021
        %1045 = vmatpush.bf16.msra.mxu0 %v1020
        %1046 = vmatpush.bf16.msra.mxu0 %v1019
        %1047 = vmatmul.bf16.gmra.mxu0 %v1028
        %v1048 = vpop.f32.mrf.mxu0
        %v1049 = vadd.f32 0.0, %v1048
        %v1050 = vpop.f32.mrf.mxu0
        %v1051 = vadd.f32 0.0, %v1050
        %1052 = vmatmul.bf16.gmra.mxu0 %v1031
        %v1053 = vpop.f32.mrf.mxu0
        %v1054 = vadd.f32 0.0, %v1053
        %v1055 = vpop.f32.mrf.mxu0
        %v1056 = vadd.f32 0.0, %v1055
        %1057 = vmatmul.bf16.gmra.mxu0 %v1034
        %v1058 = vpop.f32.mrf.mxu0
        %v1059 = vadd.f32 0.0, %v1058
        %v1060 = vpop.f32.mrf.mxu0
        %v1061 = vadd.f32 0.0, %v1060
        %1062 = vmatmul.bf16.gmra.mxu0 %v1037
        %v1063 = vpop.f32.mrf.mxu0
        %v1064 = vadd.f32 0.0, %v1063
        %v1065 = vpop.f32.mrf.mxu0
        %v1066 = vadd.f32 0.0, %v1065
        %1067 = vdwg.mxu0
        %s1068 = sld [smem:[#allocation4]]
        %v1069 = vstv %s1068
        %v1070 = vmul.f32 %v1069, %v1049
        %v1071 = vmul.f32 %v1069, %v1051
        %v1072 = vmul.f32 %v1069, %v1054
        %v1073 = vmul.f32 %v1069, %v1056
        %v1074 = vmul.f32 %v1069, %v1059
        %v1075 = vmul.f32 %v1069, %v1061
        %v1076 = vmul.f32 %v1069, %v1064
        %v1077 = vmul.f32 %v1069, %v1066
        %v1078 = vadd.f32 %v1070, %v616
        %v1079 = vadd.f32 %v1071, %v617
        %v1080 = vadd.f32 %v1072, %v618
        %v1081 = vadd.f32 %v1073, %v619
        %v1082 = vadd.f32 %v1074, %v620
        %v1083 = vadd.f32 %v1075, %v621
        %v1084 = vadd.f32 %v1076, %v622
        %v1085 = vadd.f32 %v1077, %v623
        %1086 = vst [vmem:[%s368] sm:$0xff] %v1078
        %1087 = vst [vmem:[%s368 + $0x8] sm:$0xff] %v1079
        %1088 = vst [vmem:[%s368 + $0x10] sm:$0xff] %v1080
        %1089 = vst [vmem:[%s368 + $0x18] sm:$0xff] %v1081
        %1090 = vst [vmem:[%s368 + $0x20] sm:$0xff] %v1082
        %1091 = vst [vmem:[%s368 + $0x28] sm:$0xff] %v1083
        %1092 = vst [vmem:[%s368 + $0x30] sm:$0xff] %v1084
        %1093 = vst [vmem:[%s368 + $0x38] sm:$0xff] %v1085
        %1094 = vst.msk [vmem:[%s354] sm:$0xff] %vm790, %v983
        %1095 = vst.msk [vmem:[%s354 + $0x8] sm:$0xff] %vm790, %v984
        %1096 = vst.msk [vmem:[%s354 + $0x10] sm:$0xff] %vm790, %v985
        %1097 = vst.msk [vmem:[%s354 + $0x18] sm:$0xff] %vm790, %v986
        %1098 = vst.msk [vmem:[%s354 + $0x20] sm:$0xff] %vm790, %v987
        %1099 = vst.msk [vmem:[%s354 + $0x28] sm:$0xff] %vm790, %v988
        %1100 = vst.msk [vmem:[%s354 + $0x30] sm:$0xff] %vm790, %v989
        %1101 = vst.msk [vmem:[%s354 + $0x38] sm:$0xff] %vm790, %v990
        %s1102 = smul.u32 8, %s30
        %p1103 = scmp.lt.s32.totalorder %s29, 1
        %s1104 = scalar_select %p1103, %s29, 1
        %p1105 = scmp.lt.s32.totalorder %s1102, 7
        %s1106 = scalar_select %p1105, %s1102, 7
        %s1107 = smul.addr %s1104, 8
        %s1108 = sadd.s32 %s1106, %s1107
        %s1109 = smul.addr %s1108, 8
        %s1110 = scalar_lea.vmem %s8, %s1109
        %s1111 = sand.u32 %s248, 1
        %s1112 = scalar_lea.sflag [#allocation6], %s1111
        %s1113 = sand.u32 %s248, 1
        %s1114 = smul.addr %s1113, 64
        %s1115 = scalar_lea.vmem [#allocation5], %s1114
        // Predicated region
        $region57: #{self_attn_pallas.1} parent=51 // pred_check
          %p1116 = pneg %p230
        $region58: #{self_attn_pallas.1} parent=51 // pred_check_branch
          %1118 = sbr.rel (%p1116) target = $region60
        $region59: #{self_attn_pallas.1} parent=51 // pred_region
          %s1119 = smul.u32 8, %s30
        $region60: #{self_attn_pallas.1} parent=51 // pred_fallthru
          _
        // Predicated region
        $region61: #{self_attn_pallas.1} parent=51 // pred_check
          %p1120 = pneg %p258
        $region62: #{self_attn_pallas.1} parent=51 // pred_check_branch
          %1122 = sbr.rel (%p1120) target = $region64
        $region63: #{self_attn_pallas.1} parent=51 // pred_region
          %s1123 = smul.u32 8, %s30
          %1125 = vsyncadd %s1112, 0
          %s1126 = smul.addr %s29, 8
          %s1127 = sadd.s32 %s1123, %s1126
          %s1128 = smul.addr %s1127, 8
          %s1129 = scalar_lea.hbm %s9, %s1128
          %s1130 = sshll.u32 %s1115, 4
          %s1131 = int_to_ptr.vmem [resolvable:$true] %s1130
          %s1132 = sshll.u32 %s1129, 4
          %s1133 = int_to_ptr.hbm [resolvable:$true] %s1132
          %1138 = dma.vmem_to_hbm [thread:$0]  %s1131, 1024, %s1133, %s1112, 128, 128, 8
        $region64: #{self_attn_pallas.1} parent=51 // pred_fallthru
          _
      $region52: #{self_attn_pallas.1} parent=5 // pred_fallthru
        _
      %p1139 = scmp.le.s32.totalorder 2, %s20
      // Predicated region
      $region65: #{self_attn_pallas.1} parent=5 // pred_check
        %p1140 = pneg %p1139
      $region66: #{self_attn_pallas.1} parent=5 // pred_check_branch
        %1142 = sbr.rel (%p1140) target = $region68
      $region67: #{self_attn_pallas.1} parent=5 // pred_region
        %s1143 = ssub.s32 %s20, 2
        // Predicated region
        $region69: #{self_attn_pallas.1} parent=67 // pred_check
          %p1144 = pneg %p236
        $region70: #{self_attn_pallas.1} parent=67 // pred_check_branch
          %1146 = sbr.rel (%p1144) target = $region72
        $region71: #{self_attn_pallas.1} parent=67 // pred_region
          %s1147 = smul.u32 8, %s32
          %p1148 = scmp.lt.s32.totalorder %s31, 1
          %s1149 = scalar_select %p1148, %s31, 1
          %p1150 = scmp.lt.s32.totalorder %s1147, 7
          %s1151 = scalar_select %p1150, %s1147, 7
          %s1152 = smul.addr %s1149, 8
          %s1153 = sadd.s32 %s1151, %s1152
          %s1154 = smul.addr %s1153, 8
          %s1155 = scalar_lea.vmem %s8, %s1154
        $region72: #{self_attn_pallas.1} parent=67 // pred_fallthru
          _
        // Predicated region
        $region73: #{self_attn_pallas.1} parent=67 // pred_check
          %p1156 = pneg %p264
        $region74: #{self_attn_pallas.1} parent=67 // pred_check_branch
          %1158 = sbr.rel (%p1156) target = $region76
        $region75: #{self_attn_pallas.1} parent=67 // pred_region
          %s1159 = sand.u32 %s249, 1
          %s1160 = scalar_lea.sflag [#allocation6], %s1159
          %s1161 = sand.u32 %s249, 1
          %s1162 = smul.addr %s1161, 64
          %s1163 = scalar_lea.vmem [#allocation5], %s1162
          %1165 = dma.done %s1160, 1024
        $region76: #{self_attn_pallas.1} parent=67 // pred_fallthru
          _
      $region68: #{self_attn_pallas.1} parent=5 // pred_fallthru
        _
    $region6: #{self_attn_pallas.1} parent=1 // loop_footer
      %s24 = sadd.s32 1, %s20
    $region7: #{self_attn_pallas.1} parent=1 // loop_footer_branch
      %19 = sbr.rel target = $region3
    $region8: #{self_attn_pallas.1} parent=1 // loop_exit
      _
    %1166 = vsyncpa [#allocation6], 1
    %s1167 = scalar_lea.sflag [#allocation6], 1
    %1168 = vsyncpa %s1167, 1

</llo_original>
